<compile_context>
chip_gen: v7x
topology: tpu7x:2x2x1
jax: 0.10.0
libtpu: 0.0.40
codegen_flags: <defaults>
</compile_context>

<pallas_src>
import functools

import jax
import jax.numpy as jnp
from jax.experimental import pallas as pl
from jax.experimental.pallas import tpu as pltpu


def _round_up(x, m):
    return (x + m - 1) // m * m


def _fused_mlp_kernel(*refs, layer_dims):
    """refs = (x_ref, w_0, ..., w_{L-1}, b_all_ref, o_ref).

    w_i       : bf16 [IN_i, OUT_i] (last layer padded to a lane-dense OUT)
    b_all_ref : f32  [L, BPAD]      per-layer biases, zero-padded to 128 lanes
    The activation never leaves VMEM/vregs between layers; only the final
    lane-dense [TB, OUT_PAD] slab is stored.
    """
    x_ref = refs[0]
    o_ref = refs[-1]
    b_ref = refs[-2]
    w_refs = refs[1:-2]
    num_layers = len(layer_dims)

    b_all = b_ref[...]                       # tiny [L, BPAD] f32, load once
    h = x_ref[...]                           # f32 [TB, F]
    for layer, (_, dout) in enumerate(layer_dims):
        w = w_refs[layer][...]               # bf16 [IN, OUT]
        # bf16 MXU inputs, f32 accumulation, MXU-preferred [M,K]@[K,N].
        h = jax.lax.dot_general(
            h.astype(jnp.bfloat16), w,
            dimension_numbers=(((1,), (0,)), ((), ())),
            preferred_element_type=jnp.float32,
        )
        h = h + b_all[layer, :dout]          # bias-add in f32
        if layer < num_layers - 1:
            h = jnp.maximum(h, 0.0)          # fused ReLU (VPU), f32
    o_ref[...] = h.astype(o_ref.dtype)


def fused_fcnet_forward(x, layer_params, *, batch_tile=None):
    """Run the whole FCNet_H MLP in a single Pallas kernel.

    layer_params: list of (wT [IN, OUT], b [OUT]); wT is pre-transposed and is
    cast to bf16 here.  Weights stay VMEM-resident across the batch grid while
    x/out are streamed.
    """
    B, F = x.shape
    num_layers = len(layer_params)
    out_dim = layer_params[-1][0].shape[1]

    # ---- batch tiling: stream x/out, keep weights VMEM-resident -----------
    if batch_tile is not None:
        if batch_tile <= 0:
            raise ValueError(f"batch_tile must be positive, got {batch_tile}")
        TB = _round_up(batch_tile, 8)
    else:
        B8 = _round_up(max(B, 1), 8)
        if B8 > 1024:
            TB = 512                          # ~85% HBM-roofline sweet spot
        elif B8 >= 256:
            TB = _round_up(B8 // 2, 8)        # >=2 grid steps -> v7x megacore
        else:
            TB = B8
    B_pad = _round_up(max(B, 1), TB)
    num_tiles = B_pad // TB
    if B_pad != B:
        x = jnp.pad(x, ((0, B_pad - B), (0, 0)))

    # ---- lane-dense output: pad last layer's OUT up to a multiple of 128 --
    OUT_PAD = _round_up(out_dim, 128)
    wts, biases = [], []
    for li, (wT, b) in enumerate(layer_params):
        wT = jnp.asarray(wT, jnp.bfloat16)
        b = jnp.asarray(b, jnp.float32)
        if li == num_layers - 1 and OUT_PAD != out_dim:
            wT = jnp.pad(wT, ((0, 0), (0, OUT_PAD - out_dim)))
            b = jnp.pad(b, ((0, OUT_PAD - out_dim),))
        wts.append(wT)
        biases.append(b)
    layer_dims = tuple((w.shape[0], w.shape[1]) for w in wts)

    # Single concatenated bias slab [L, BPAD] (each layer zero-padded to 128
    # lanes) -> one VMEM input instead of L tiny (1, OUT) inputs.
    BPAD = _round_up(max(d for _, d in layer_dims), 128)
    b_all = jnp.zeros((num_layers, BPAD), jnp.float32)
    for li, b in enumerate(biases):
        b_all = b_all.at[li, : b.shape[0]].set(b)

    # ---- BlockSpecs --------------------------------------------------------
    # x / out stream across the batch grid; weights & the bias slab are
    # grid-invariant (index_map -> (0, 0)) and single-buffered.
    in_specs = [pl.BlockSpec((TB, F), lambda i: (i, 0))]
    for (din, dout) in layer_dims:
        in_specs.append(
            pl.BlockSpec((din, dout), lambda i: (0, 0),
                         pipeline_mode=pl.Buffered(1)))
    in_specs.append(
        pl.BlockSpec((num_layers, BPAD), lambda i: (0, 0),
                     pipeline_mode=pl.Buffered(1)))
    out_specs = pl.BlockSpec((TB, OUT_PAD), lambda i: (i, 0))

    # TODO(synk): if any single wT exceeds the resident VMEM budget
    # (~8-16 MiB/layer, half that headroom on v7x), add a grid axis tiling OUT
    # (parallel) and/or IN (arbitrary + pl.when-guarded accumulator) for that
    # layer instead of a full-block weight BlockSpec.

    # ---- VMEM limit & cost estimate ---------------------------------------
    w_bytes = sum(din * dout * 2 for din, dout in layer_dims)   # bf16, 1 buffer
    b_bytes = num_layers * BPAD * 4
    x_bytes = 2 * TB * F * x.dtype.itemsize                     # double-buffered
    o_bytes = 2 * TB * OUT_PAD * 4
    max_out = max(d for _, d in layer_dims)
    h_bytes = 6 * TB * max_out * 4                              # h f32 + bf16 copies
    footprint = w_bytes + b_bytes + x_bytes + o_bytes + h_bytes
    vmem_limit = int(min(max(footprint * 3 // 2 + (4 << 20), 16 << 20), 64 << 20))

    cost = pl.CostEstimate(
        flops=2 * B_pad * sum(din * dout for din, dout in layer_dims),
        transcendentals=0,
        bytes_accessed=(w_bytes + b_bytes
                        + B_pad * F * x.dtype.itemsize
                        + B_pad * OUT_PAD * x.dtype.itemsize),
    )

    kernel = functools.partial(_fused_mlp_kernel, layer_dims=layer_dims)
    out_pad = pl.pallas_call(
        kernel,
        out_shape=jax.ShapeDtypeStruct((B_pad, OUT_PAD), x.dtype),
        grid=(num_tiles,),
        in_specs=in_specs,
        out_specs=out_specs,
        compiler_params=pltpu.CompilerParams(
            dimension_semantics=("parallel",),   # v7x megacore-shardable batch
            vmem_limit_bytes=vmem_limit,
        ),
        cost_estimate=cost,
    )(x, *wts, b_all)

    # Slice off batch padding and the lane-padding of the output channel.
    return out_pad[:B, :out_dim]


def _torch_linear_init(key, out_features, in_features, dtype=jnp.float32):
    """Deterministic init mimicking torch.nn.Linear default (U(-k, k), k=1/sqrt(in))."""
    kw, kb = jax.random.split(key)
    bound = 1.0 / jnp.sqrt(jnp.float32(in_features))
    w = jax.random.uniform(kw, (out_features, in_features), dtype,
                           minval=-bound, maxval=bound)
    b = jax.random.uniform(kb, (out_features,), dtype,
                           minval=-bound, maxval=bound)
    return w, b


class FCNetHParams:
    """Parameter container for FCNet_H (if_bn=False, if_dp=False).

    Weights are stored pre-transposed as [IN, OUT] and cast to bf16 (MXU
    inputs); biases stay f32.
    """

    def __init__(self, key, feature_channel, output_channel, hidden_list):
        self.feature_channel = feature_channel
        self.output_channel = output_channel
        self.hidden_list = list(hidden_list)

        dims_in = [feature_channel] + self.hidden_list[:-1]
        dims_out = self.hidden_list
        keys = jax.random.split(key, len(dims_out) + 3)

        # first_layer + mediate_layer blocks (Linear + ReLU each)
        self.layer_params = []  # list of (wT bf16 [IN, OUT], b f32 [OUT])
        for k, din, dout in zip(keys[:len(dims_out)], dims_in, dims_out):
            w, b = _torch_linear_init(k, dout, din)      # torch layout [OUT, IN]
            self.layer_params.append((jnp.asarray(w.T, jnp.bfloat16), b))

        # last_layer (Linear, no activation)
        lw, lb = _torch_linear_init(
            keys[len(dims_out)], output_channel, self.hidden_list[-1])
        self.layer_params.append((jnp.asarray(lw.T, jnp.bfloat16), lb))

        # Embedding tables exist in __init__ but are unused in forward.
        self.tissue_embedding = jax.random.normal(
            keys[len(dims_out) + 1], (32, 32), jnp.float32)
        self.sex_embedding = jax.random.normal(
            keys[len(dims_out) + 2], (4, 32), jnp.float32)


def fcnet_h_forward(params: FCNetHParams, x, *, batch_tile=None):
    return fused_fcnet_forward(x, params.layer_params, batch_tile=batch_tile)


if __name__ == "__main__":
    key = jax.random.PRNGKey(0)
    k_param, k_x = jax.random.split(key)

    feature_channel = 16
    output_channel = 4
    hidden_list = [32, 32]
    batch = 8

    params = FCNetHParams(k_param, feature_channel, output_channel, hidden_list)
    x = jax.random.normal(k_x, (batch, feature_channel), jnp.float32)

    out = fcnet_h_forward(params, x)
    out = jax.block_until_ready(out)

    # Pure-JAX reference (same bf16 weights / f32 accumulation as the kernel).
    ref = x
    for i, (wT, b) in enumerate(params.layer_params):
        ref = jax.lax.dot_general(
            ref.astype(jnp.bfloat16), wT,
            dimension_numbers=(((1,), (0,)), ((), ())),
            preferred_element_type=jnp.float32) + b
        if i < len(params.layer_params) - 1:
            ref = jnp.maximum(ref, 0.0)

    assert out.shape == (batch, output_channel), out.shape
    assert jnp.allclose(out, ref, atol=1e-3, rtol=1e-3), "mismatch vs reference"

    print("KERNEL_OK")
</pallas_src>

<mosaic_0001>
module attributes {stable_mosaic.version = 11 : i64} {
  func.func @_fused_mlp_kernel(%arg0: i32, %arg1: memref<8x16xf32, #tpu.memory_space<vmem>>, %arg2: memref<16x32xbf16, #tpu.memory_space<vmem>>, %arg3: memref<32x32xbf16, #tpu.memory_space<vmem>>, %arg4: memref<32x128xbf16, #tpu.memory_space<vmem>>, %arg5: memref<3x128xf32, #tpu.memory_space<vmem>>, %arg6: memref<8x128xf32, #tpu.memory_space<vmem>>) attributes {dimension_semantics = [#tpu.dimension_semantics<parallel>], iteration_bounds = array<i64: 1>, scalar_prefetch = 0 : i64, scratch_operands = 0 : i64, tpu.core_type = #tpu.core_type<tc>, window_params = [{transform_indices = @transform_0, window_bounds = array<i64: 8, 16>}, {pipeline_mode = #tpu.pipeline_mode<synchronous>, transform_indices = @transform_1, window_bounds = array<i64: 16, 32>}, {pipeline_mode = #tpu.pipeline_mode<synchronous>, transform_indices = @transform_2, window_bounds = array<i64: 32, 32>}, {pipeline_mode = #tpu.pipeline_mode<synchronous>, transform_indices = @transform_3, window_bounds = array<i64: 32, 128>}, {pipeline_mode = #tpu.pipeline_mode<synchronous>, transform_indices = @transform_4, window_bounds = array<i64: 3, 128>}, {transform_indices = @transform_5, window_bounds = array<i64: 8, 128>}]} {
    %c0 = arith.constant 0 : index
    %c0_0 = arith.constant 0 : index
    %0 = vector.load %arg5[%c0, %c0_0] : memref<3x128xf32, #tpu.memory_space<vmem>>, vector<3x128xf32>
    %c0_1 = arith.constant 0 : index
    %c0_2 = arith.constant 0 : index
    %1 = vector.load %arg1[%c0_1, %c0_2] : memref<8x16xf32, #tpu.memory_space<vmem>>, vector<8x16xf32>
    %c0_3 = arith.constant 0 : index
    %c0_4 = arith.constant 0 : index
    %2 = vector.load %arg2[%c0_3, %c0_4] : memref<16x32xbf16, #tpu.memory_space<vmem>>, vector<16x32xbf16>
    %3 = arith.truncf %1 : vector<8x16xf32> to vector<8x16xbf16>
    %cst = arith.constant dense<0.000000e+00> : vector<8x32xf32>
    %4 = tpu.matmul %3, %2, %cst {dimension_numbers = #tpu.dot_dimension_numbers<[1], [0], [0], [1], [0, 0, 1, 1], [], []>} : vector<8x16xbf16>, vector<16x32xbf16>, vector<8x32xf32> -> vector<8x32xf32>
    %5 = vector.extract_strided_slice %0 {offsets = [0, 0], sizes = [1, 32], strides = [1, 1]} : vector<3x128xf32> to vector<1x32xf32>
    %6 = vector.shape_cast %5 : vector<1x32xf32> to vector<32xf32>
    %7 = vector.shape_cast %6 : vector<32xf32> to vector<1x32xf32>
    %8 = vector.broadcast %7 : vector<1x32xf32> to vector<8x32xf32>
    %9 = arith.addf %4, %8 : vector<8x32xf32>
    %cst_5 = arith.constant 0.000000e+00 : f32
    %10 = vector.broadcast %cst_5 : f32 to vector<8x32xf32>
    %11 = arith.maximumf %9, %10 : vector<8x32xf32>
    %c0_6 = arith.constant 0 : index
    %c0_7 = arith.constant 0 : index
    %12 = vector.load %arg3[%c0_6, %c0_7] : memref<32x32xbf16, #tpu.memory_space<vmem>>, vector<32x32xbf16>
    %13 = arith.truncf %11 : vector<8x32xf32> to vector<8x32xbf16>
    %cst_8 = arith.constant dense<0.000000e+00> : vector<8x32xf32>
    %14 = tpu.matmul %13, %12, %cst_8 {dimension_numbers = #tpu.dot_dimension_numbers<[1], [0], [0], [1], [0, 0, 1, 1], [], []>} : vector<8x32xbf16>, vector<32x32xbf16>, vector<8x32xf32> -> vector<8x32xf32>
    %15 = vector.extract_strided_slice %0 {offsets = [1, 0], sizes = [1, 32], strides = [1, 1]} : vector<3x128xf32> to vector<1x32xf32>
    %16 = vector.shape_cast %15 : vector<1x32xf32> to vector<32xf32>
    %17 = vector.shape_cast %16 : vector<32xf32> to vector<1x32xf32>
    %18 = vector.broadcast %17 : vector<1x32xf32> to vector<8x32xf32>
    %19 = arith.addf %14, %18 : vector<8x32xf32>
    %cst_9 = arith.constant 0.000000e+00 : f32
    %20 = vector.broadcast %cst_9 : f32 to vector<8x32xf32>
    %21 = arith.maximumf %19, %20 : vector<8x32xf32>
    %c0_10 = arith.constant 0 : index
    %c0_11 = arith.constant 0 : index
    %22 = vector.load %arg4[%c0_10, %c0_11] : memref<32x128xbf16, #tpu.memory_space<vmem>>, vector<32x128xbf16>
    %23 = arith.truncf %21 : vector<8x32xf32> to vector<8x32xbf16>
    %cst_12 = arith.constant dense<0.000000e+00> : vector<8x128xf32>
    %24 = tpu.matmul %23, %22, %cst_12 {dimension_numbers = #tpu.dot_dimension_numbers<[1], [0], [0], [1], [0, 0, 1, 1], [], []>} : vector<8x32xbf16>, vector<32x128xbf16>, vector<8x128xf32> -> vector<8x128xf32>
    %25 = vector.extract_strided_slice %0 {offsets = [2, 0], sizes = [1, 128], strides = [1, 1]} : vector<3x128xf32> to vector<1x128xf32>
    %26 = vector.shape_cast %25 : vector<1x128xf32> to vector<128xf32>
    %27 = vector.shape_cast %26 : vector<128xf32> to vector<1x128xf32>
    %28 = vector.broadcast %27 : vector<1x128xf32> to vector<8x128xf32>
    %29 = arith.addf %24, %28 : vector<8x128xf32>
    %c0_13 = arith.constant 0 : index
    %c0_14 = arith.constant 0 : index
    %30 = vector.load %arg6[%c0_13, %c0_14] : memref<8x128xf32, #tpu.memory_space<vmem>>, vector<8x128xf32>
    tpu.vector_store %arg6[%c0_13, %c0_14], %29 {strides = array<i32>} : memref<8x128xf32, #tpu.memory_space<vmem>>, vector<8x128xf32>,
    return
  }
  func.func @transform_0(%arg0: i32) -> (i32, i32) {
    %c0_i32 = arith.constant 0 : i32
    %c0_i32_0 = arith.constant 0 : i32
    return %arg0, %c0_i32 : i32, i32
  }
  func.func @transform_1(%arg0: i32) -> (i32, i32) {
    %c0_i32 = arith.constant 0 : i32
    %c0_i32_0 = arith.constant 0 : i32
    %c0_i32_1 = arith.constant 0 : i32
    return %c0_i32, %c0_i32_0 : i32, i32
  }
  func.func @transform_2(%arg0: i32) -> (i32, i32) {
    %c0_i32 = arith.constant 0 : i32
    %c0_i32_0 = arith.constant 0 : i32
    %c0_i32_1 = arith.constant 0 : i32
    return %c0_i32, %c0_i32_0 : i32, i32
  }
  func.func @transform_3(%arg0: i32) -> (i32, i32) {
    %c0_i32 = arith.constant 0 : i32
    %c0_i32_0 = arith.constant 0 : i32
    %c0_i32_1 = arith.constant 0 : i32
    return %c0_i32, %c0_i32_0 : i32, i32
  }
  func.func @transform_4(%arg0: i32) -> (i32, i32) {
    %c0_i32 = arith.constant 0 : i32
    %c0_i32_0 = arith.constant 0 : i32
    %c0_i32_1 = arith.constant 0 : i32
    return %c0_i32, %c0_i32_0 : i32, i32
  }
  func.func @transform_5(%arg0: i32) -> (i32, i32) {
    %c0_i32 = arith.constant 0 : i32
    %c0_i32_0 = arith.constant 0 : i32
    return %arg0, %c0_i32 : i32, i32
  }
}

</mosaic_0001>

<llo_original>
// kernel: tpu_custom_call.1
$region0: #{tpu_custom_call.1}
  #allocation0 [shape = 'u32[]', space=smem, size = 0x4, offset = 0x4, fixed_abs, tag = 'smem constant byte address 0x4 - core index']
  #allocation1 [shape = 'u32[144,128]{1,0:T(1,128)}', space=vmem, size = 0x12000, scoped, tag = 'internal scratch']
  %s0 = inlined_call_operand.hbm [shape: f32[8,16], index: 0, kind: input, shape index: {}]
  %s1 = inlined_call_operand.hbm [shape: bf16[16,32], index: 1, kind: input, shape index: {}]
  %s2 = inlined_call_operand.hbm [shape: bf16[32,32], index: 2, kind: input, shape index: {}]
  %s3 = inlined_call_operand.hbm [shape: bf16[32,128], index: 3, kind: input, shape index: {}]
  %s4 = inlined_call_operand.vmem [shape: f32[3,128], index: 4, kind: input, shape index: {}]
  %s5 = inlined_call_operand.hbm [shape: f32[8,128], index: 5, kind: output, shape index: {}]
  %s6 = sld [smem:[#allocation0]]
  $region46: #{tpu_custom_call.1} parent=0
    _
  %s8 = ssub.s32 1, %s6
  %s9 = scalar_select 0, %s8, %s6
  $region1: #{tpu_custom_call.1} parent=0
    #allocation2 [shape = 'u8[4096]{0}', space=vmem, size = 0x1000, scoped, tag = 'input window, operand 0, single buffered']
    #allocation3 [shape = 's32[1]{0}', space=sflag, size = 0x4, scoped, tag = 'scoped memory for tpu_custom_call.1']
    #allocation4 [shape = 's32[1]{0}', space=sflag, size = 0x4, scoped, tag = 'scoped memory for tpu_custom_call.1']
    #allocation5 [shape = 'u8[4096]{0}', space=vmem, size = 0x1000, scoped, tag = 'input window, operand 1, single buffered']
    #allocation6 [shape = 's32[1]{0}', space=sflag, size = 0x4, scoped, tag = 'scoped memory for tpu_custom_call.1']
    #allocation7 [shape = 'u8[8192]{0}', space=vmem, size = 0x2000, scoped, tag = 'input window, operand 2, single buffered']
    #allocation8 [shape = 'u8[8192]{0}', space=vmem, size = 0x2000, scoped, tag = 'input window, operand 3, single buffered']
    #allocation9 [shape = 's32[1]{0}', space=sflag, size = 0x4, scoped, tag = 'scoped memory for tpu_custom_call.1']
    #allocation10 [shape = 'u8[4096]{0}', space=vmem, size = 0x1000, scoped, tag = 'output window, operand 0, single buffered']
    %10 = vsyncpa [#allocation3], 0
    %11 = vsyncpa [#allocation6], 0
    %12 = vsyncpa [#allocation9], 0
    %13 = vsyncpa [#allocation4], 0
    // Predicated region
    $region2: #{tpu_custom_call.1} parent=1 // pred_check
      _
    $region3: #{tpu_custom_call.1} parent=1 // pred_check_branch
      %15 = sbr.rel (0) target = $region5
    $region4: #{tpu_custom_call.1} parent=1 // pred_region
      %s17 = ssub.s32 128, 128
      %18 = vsyncadd [#allocation3], %s17
      %s20 = sshll.u32 [#allocation2], 4
      %s21 = int_to_ptr.vmem [resolvable:$true] %s20
      %23 = dma.hbm_to_vmem [thread:$0]  %s0, 128, %s21, [#allocation3]
    $region5: #{tpu_custom_call.1} parent=1 // pred_fallthru
      _
    // Predicated region
    $region6: #{tpu_custom_call.1} parent=1 // pred_check
      _
    $region7: #{tpu_custom_call.1} parent=1 // pred_check_branch
      %25 = sbr.rel (0) target = $region9
    $region8: #{tpu_custom_call.1} parent=1 // pred_region
      %s27 = ssub.s32 128, 128
      %28 = vsyncadd [#allocation6], %s27
      %s29 = sshll.u32 [#allocation5], 4
      %s30 = int_to_ptr.vmem [resolvable:$true] %s29
      %35 = dma.hbm_to_vmem [thread:$0]  %s1, 128, %s30, [#allocation6], 64, 64, 4
    $region9: #{tpu_custom_call.1} parent=1 // pred_fallthru
      _
    // Predicated region
    $region10: #{tpu_custom_call.1} parent=1 // pred_check
      _
    $region11: #{tpu_custom_call.1} parent=1 // pred_check_branch
      %37 = sbr.rel (0) target = $region13
    $region12: #{tpu_custom_call.1} parent=1 // pred_region
      %s39 = ssub.s32 256, 256
      %40 = vsyncadd [#allocation6], %s39
      %s41 = sshll.u32 [#allocation7], 4
      %s42 = int_to_ptr.vmem [resolvable:$true] %s41
      %47 = dma.hbm_to_vmem [thread:$0]  %s2, 256, %s42, [#allocation6], 64, 64, 4
    $region13: #{tpu_custom_call.1} parent=1 // pred_fallthru
      _
    // Predicated region
    $region14: #{tpu_custom_call.1} parent=1 // pred_check
      _
    $region15: #{tpu_custom_call.1} parent=1 // pred_check_branch
      %49 = sbr.rel (0) target = $region17
    $region16: #{tpu_custom_call.1} parent=1 // pred_region
      %s51 = ssub.s32 256, 256
      %52 = vsyncadd [#allocation9], %s51
      %s53 = sshll.u32 [#allocation8], 4
      %s54 = int_to_ptr.vmem [resolvable:$true] %s53
      %59 = dma.hbm_to_vmem [thread:$0]  %s3, 256, %s54, [#allocation9], 64, 64, 4
    $region17: #{tpu_custom_call.1} parent=1 // pred_fallthru
      _
    // Predicated region
    $region18: #{tpu_custom_call.1} parent=1 // pred_check
      _
    $region19: #{tpu_custom_call.1} parent=1 // pred_check_branch
      %61 = sbr.rel (0) target = $region21
    $region20: #{tpu_custom_call.1} parent=1 // pred_region
      _
    $region21: #{tpu_custom_call.1} parent=1 // pred_fallthru
      _
    // Predicated region
    $region22: #{tpu_custom_call.1} parent=1 // pred_check
      _
    $region23: #{tpu_custom_call.1} parent=1 // pred_check_branch
      %63 = sbr.rel (0) target = $region25
    $region24: #{tpu_custom_call.1} parent=1 // pred_region
      %64 = dma.done [#allocation3], 128
    $region25: #{tpu_custom_call.1} parent=1 // pred_fallthru
      _
    // Predicated region
    $region26: #{tpu_custom_call.1} parent=1 // pred_check
      _
    $region27: #{tpu_custom_call.1} parent=1 // pred_check_branch
      %66 = sbr.rel (0) target = $region29
    $region28: #{tpu_custom_call.1} parent=1 // pred_region
      %67 = dma.done [#allocation6], 128
    $region29: #{tpu_custom_call.1} parent=1 // pred_fallthru
      _
    // Predicated region
    $region30: #{tpu_custom_call.1} parent=1 // pred_check
      _
    $region31: #{tpu_custom_call.1} parent=1 // pred_check_branch
      %69 = sbr.rel (0) target = $region33
    $region32: #{tpu_custom_call.1} parent=1 // pred_region
      %70 = dma.done [#allocation6], 256
    $region33: #{tpu_custom_call.1} parent=1 // pred_fallthru
      _
    // Predicated region
    $region34: #{tpu_custom_call.1} parent=1 // pred_check
      _
    $region35: #{tpu_custom_call.1} parent=1 // pred_check_branch
      %72 = sbr.rel (0) target = $region37
    $region36: #{tpu_custom_call.1} parent=1 // pred_region
      %73 = dma.done [#allocation9], 256
    $region37: #{tpu_custom_call.1} parent=1 // pred_fallthru
      _
    %v75 = vld [vmem:[%s4] sm:$0x7]
    %v76 = vld [vmem:[#allocation2] sm:$0xff]
    %v77 = vld [vmem:[#allocation5] sm:$0xf]
    %v78 = vld [vmem:[#allocation5 + $0x4] sm:$0xf]
    %v79 = vpack.c.bf16 %v76, %v76
    %v80 = vlaneseq
    %v81 = vshrl.u32 %v80, 7
    %v82 = vsub.s32 0, %v81
    %v83 = vrot.slane %v75, %v82
    %v86 = vunpack.c.l.b16 %v77
    %v87 = vunpack.c.l.b16 %v78
    %v88 = vpack.c.b16 %v87, %v86
    %vm90 = vcmask 130048
    %v92 = vsel %vm90, %v79, 0
    %94 = vmatprep.subr.bf16.mxu0 0
    %95 = vmatpush1.bf16.msra.mxu0 %v88
    %96 = vmatprep.subr.bf16.mxu0 0
    %97 = vmatpush1.bf16.msra.mxu0 0
    %98 = vmatprep.subr.bf16.mxu0 0
    %99 = vmatpush1.bf16.msra.mxu0 0
    %100 = vmatprep.subr.bf16.mxu0 0
    %101 = vmatpush1.bf16.msra.mxu0 0
    %102 = vmatprep.subr.bf16.mxu0 0
    %103 = vmatpush1.bf16.msra.mxu0 0
    %104 = vmatprep.subr.bf16.mxu0 0
    %105 = vmatpush1.bf16.msra.mxu0 0
    %106 = vmatprep.subr.bf16.mxu0 0
    %107 = vmatpush1.bf16.msra.mxu0 0
    %108 = vmatprep.subr.bf16.mxu0 0
    %109 = vmatpush1.bf16.msra.mxu0 0
    %110 = vmatprep.subr.bf16.mxu0 0
    %111 = vmatpush1.bf16.msra.mxu0 0
    %112 = vmatprep.subr.bf16.mxu0 0
    %113 = vmatpush1.bf16.msra.mxu0 0
    %114 = vmatprep.subr.bf16.mxu0 0
    %115 = vmatpush1.bf16.msra.mxu0 0
    %116 = vmatprep.subr.bf16.mxu0 0
    %117 = vmatpush1.bf16.msra.mxu0 0
    %118 = vmatprep.subr.bf16.mxu0 0
    %119 = vmatpush1.bf16.msra.mxu0 0
    %120 = vmatprep.subr.bf16.mxu0 0
    %121 = vmatpush1.bf16.msra.mxu0 0
    %122 = vmatprep.subr.bf16.mxu0 0
    %123 = vmatpush1.bf16.msra.mxu0 0
    %124 = vmatprep.subr.bf16.mxu0 0
    %125 = vmatpush1.bf16.msra.mxu0 0
    %126 = vmatprep.mubr.bf16.mxu0 0
    %127 = vmatmul.mubr.bf16.gmra.mrb[0].mxu0 %v92
    %v128 = vpop.f32.mrb[0].mxu0
    %v129 = vadd.f32 %v83, %v128
    %v130 = vpop.f32.mrb[0].mxu0
    %v131 = vpop.f32.mrb[0].mxu0
    %v132 = vpop.f32.mrb[0].mxu0
    %133 = vdwg.mxu0
    %v134 = vmax.f32 %v129, 0.0
    %v135 = vld [vmem:[#allocation7] sm:$0xf]
    %v136 = vld [vmem:[#allocation7 + $0x4] sm:$0xf]
    %v137 = vld [vmem:[#allocation7 + $0x8] sm:$0xf]
    %v138 = vld [vmem:[#allocation7 + $0xc] sm:$0xf]
    %v139 = vpack.c.bf16 %v134, %v134
    %v140 = vlaneseq
    %v141 = vshrl.u32 %v140, 7
    %v142 = vsub.s32 1, %v141
    %v143 = vrot.slane %v75, %v142
    %v148 = vunpack.c.l.b16 %v135
    %v149 = vunpack.c.l.b16 %v136
    %v150 = vunpack.c.l.b16 %v137
    %v151 = vunpack.c.l.b16 %v138
    %v152 = vpack.c.b16 %v149, %v148
    %v153 = vpack.c.b16 %v151, %v150
    %vm156 = vcmask 261120
    %v158 = vsel %vm156, %v139, 0
    %160 = vmatprep.subr.bf16.mxu0 0
    %161 = vmatpush1.bf16.msra.mxu0 %v152
    %162 = vmatprep.subr.bf16.mxu0 0
    %163 = vmatpush1.bf16.msra.mxu0 %v153
    %164 = vmatprep.subr.bf16.mxu0 0
    %165 = vmatpush1.bf16.msra.mxu0 0
    %166 = vmatprep.subr.bf16.mxu0 0
    %167 = vmatpush1.bf16.msra.mxu0 0
    %168 = vmatprep.subr.bf16.mxu0 0
    %169 = vmatpush1.bf16.msra.mxu0 0
    %170 = vmatprep.subr.bf16.mxu0 0
    %171 = vmatpush1.bf16.msra.mxu0 0
    %172 = vmatprep.subr.bf16.mxu0 0
    %173 = vmatpush1.bf16.msra.mxu0 0
    %174 = vmatprep.subr.bf16.mxu0 0
    %175 = vmatpush1.bf16.msra.mxu0 0
    %176 = vmatprep.subr.bf16.mxu0 0
    %177 = vmatpush1.bf16.msra.mxu0 0
    %178 = vmatprep.subr.bf16.mxu0 0
    %179 = vmatpush1.bf16.msra.mxu0 0
    %180 = vmatprep.subr.bf16.mxu0 0
    %181 = vmatpush1.bf16.msra.mxu0 0
    %182 = vmatprep.subr.bf16.mxu0 0
    %183 = vmatpush1.bf16.msra.mxu0 0
    %184 = vmatprep.subr.bf16.mxu0 0
    %185 = vmatpush1.bf16.msra.mxu0 0
    %186 = vmatprep.subr.bf16.mxu0 0
    %187 = vmatpush1.bf16.msra.mxu0 0
    %188 = vmatprep.subr.bf16.mxu0 0
    %189 = vmatpush1.bf16.msra.mxu0 0
    %190 = vmatprep.subr.bf16.mxu0 0
    %191 = vmatpush1.bf16.msra.mxu0 0
    %192 = vmatprep.mubr.bf16.mxu0 0
    %193 = vmatmul.mubr.bf16.gmra.mrb[0].mxu0 %v158
    %v194 = vpop.f32.mrb[0].mxu0
    %v195 = vadd.f32 %v143, %v194
    %v196 = vpop.f32.mrb[0].mxu0
    %v197 = vpop.f32.mrb[0].mxu0
    %v198 = vpop.f32.mrb[0].mxu0
    %199 = vdwg.mxu0
    %v200 = vmax.f32 %v195, 0.0
    %v201 = vld [vmem:[#allocation8] sm:$0xf]
    %v202 = vld [vmem:[#allocation8 + $0x4] sm:$0xf]
    %v203 = vld [vmem:[#allocation8 + $0x8] sm:$0xf]
    %v204 = vld [vmem:[#allocation8 + $0xc] sm:$0xf]
    %v205 = vpack.c.bf16 %v200, %v200
    %v206 = vlaneseq
    %v207 = vshrl.u32 %v206, 7
    %v208 = vsub.s32 2, %v207
    %v209 = vrot.slane %v75, %v208
    %v214 = vunpack.c.l.b16 %v201
    %v215 = vunpack.c.l.b16 %v202
    %v216 = vunpack.c.l.b16 %v203
    %v217 = vunpack.c.l.b16 %v204
    %v218 = vpack.c.b16 %v215, %v214
    %v219 = vpack.c.b16 %v217, %v216
    %v223 = vsel %vm156, %v205, 0
    %225 = vmatprep.subr.bf16.mxu0 0
    %226 = vmatpush1.bf16.msra.mxu0 %v218
    %227 = vmatprep.subr.bf16.mxu0 0
    %228 = vmatpush1.bf16.msra.mxu0 %v219
    %229 = vmatprep.subr.bf16.mxu0 0
    %230 = vmatpush1.bf16.msra.mxu0 0
    %231 = vmatprep.subr.bf16.mxu0 0
    %232 = vmatpush1.bf16.msra.mxu0 0
    %233 = vmatprep.subr.bf16.mxu0 0
    %234 = vmatpush1.bf16.msra.mxu0 0
    %235 = vmatprep.subr.bf16.mxu0 0
    %236 = vmatpush1.bf16.msra.mxu0 0
    %237 = vmatprep.subr.bf16.mxu0 0
    %238 = vmatpush1.bf16.msra.mxu0 0
    %239 = vmatprep.subr.bf16.mxu0 0
    %240 = vmatpush1.bf16.msra.mxu0 0
    %241 = vmatprep.subr.bf16.mxu0 0
    %242 = vmatpush1.bf16.msra.mxu0 0
    %243 = vmatprep.subr.bf16.mxu0 0
    %244 = vmatpush1.bf16.msra.mxu0 0
    %245 = vmatprep.subr.bf16.mxu0 0
    %246 = vmatpush1.bf16.msra.mxu0 0
    %247 = vmatprep.subr.bf16.mxu0 0
    %248 = vmatpush1.bf16.msra.mxu0 0
    %249 = vmatprep.subr.bf16.mxu0 0
    %250 = vmatpush1.bf16.msra.mxu0 0
    %251 = vmatprep.subr.bf16.mxu0 0
    %252 = vmatpush1.bf16.msra.mxu0 0
    %253 = vmatprep.subr.bf16.mxu0 0
    %254 = vmatpush1.bf16.msra.mxu0 0
    %255 = vmatprep.subr.bf16.mxu0 0
    %256 = vmatpush1.bf16.msra.mxu0 0
    %257 = vmatprep.mubr.bf16.mxu0 0
    %258 = vmatmul.mubr.bf16.gmra.mrb[0].mxu0 %v223
    %v259 = vpop.f32.mrb[0].mxu0
    %v260 = vadd.f32 %v209, %v259
    %v261 = vpop.f32.mrb[0].mxu0
    %v262 = vpop.f32.mrb[0].mxu0
    %v263 = vpop.f32.mrb[0].mxu0
    %264 = vdwg.mxu0
    %265 = vst [vmem:[#allocation10] sm:$0xff] %v260
    // Predicated region
    $region38: #{tpu_custom_call.1} parent=1 // pred_check
      _
    $region39: #{tpu_custom_call.1} parent=1 // pred_check_branch
      %267 = sbr.rel (0) target = $region41
    $region40: #{tpu_custom_call.1} parent=1 // pred_region
      %s269 = ssub.s32 128, 128
      %270 = vsyncadd [#allocation4], %s269
      %s272 = sshll.u32 [#allocation10], 4
      %s273 = int_to_ptr.vmem [resolvable:$true] %s272
      %275 = dma.vmem_to_hbm [thread:$0]  %s273, 128, %s5, [#allocation4]
    $region41: #{tpu_custom_call.1} parent=1 // pred_fallthru
      _
    // Predicated region
    $region42: #{tpu_custom_call.1} parent=1 // pred_check
      _
    $region43: #{tpu_custom_call.1} parent=1 // pred_check_branch
      %277 = sbr.rel (0) target = $region45
    $region44: #{tpu_custom_call.1} parent=1 // pred_region
      %278 = dma.done [#allocation4], 128
    $region45: #{tpu_custom_call.1} parent=1 // pred_fallthru
      _
    %279 = vsyncpa [#allocation3], 1
    %280 = vsyncpa [#allocation6], 1
    %281 = vsyncpa [#allocation9], 1
    %282 = vsyncpa [#allocation4], 1

</llo_original>
